<compile_context>
chip_gen: v5e
topology: v5e:2x2
jax: 0.10.0
libtpu: 0.0.40
codegen_flags: <defaults>
</compile_context>

<pallas_src>
import functools

import jax
import jax.numpy as jnp
from jax.experimental import pallas as pl
from jax.experimental.pallas import tpu as pltpu


def _round_up(x, m):
    return (x + m - 1) // m * m


def _pow_beta(x, beta):
    """x ** beta without hitting the EUP exp/log path for common betas."""
    b = float(beta)
    if b == 2.0:
        return x * x
    if b.is_integer() and 1.0 <= b <= 8.0:
        y = x
        for _ in range(int(b) - 1):
            y = y * x
        return y
    # Non-integer fallback; clamp so pow(0, b) cannot NaN via exp(b*log(0)).
    return jnp.power(jnp.maximum(x, jnp.finfo(jnp.float32).tiny), b)


def _qfl_kernel(pred_ref, tgt_ref, out_ref, acc_ref, *,
                beta, n_rows, block_rows, steps_per_core):
    p = pl.program_id(0)      # core-parallel axis (row-range split)
    i = pl.program_id(1)      # reduction axis (this core's row blocks)

    @pl.when(i == 0)
    def _init():
        acc_ref[...] = jnp.zeros_like(acc_ref)

    pred = pred_ref[...].astype(jnp.float32)        # (TN, C)
    tgt = tgt_ref[...]                              # (TN, 2) f32
    label = tgt[:, 0:1].astype(jnp.int32)           # exact for class indices
    score = tgt[:, 1:2]                             # (TN, 1)

    # Two EUP transcendentals per element (tanh + log1p); no exp / reciprocal.
    #   sigmoid(x)  = 0.5 + 0.5 * tanh(x / 2)
    #   softplus(x) = log(1 + e^x) = -log1p(-sigmoid(x))   (guarded for big x)
    sig = 0.5 + 0.5 * jnp.tanh(0.5 * pred)
    softplus = jnp.where(pred > 8.0, pred, -jnp.log1p(-sig))

    # Negative branch on the full tile: BCE(pred, 0) * sigmoid^beta.
    neg = softplus * _pow_beta(sig, beta)

    # Positive branch on the full tile (pure VPU; zero lane reductions):
    #   BCE(pred, score) = softplus(pred) - pred * score
    score_b = jnp.broadcast_to(score, pred.shape)
    pos = (softplus - pred * score_b) * _pow_beta(jnp.abs(score_b - sig), beta)

    # (row, col) is positive iff col == label; col spans [0, C) so this also
    # encodes the "0 <= label < num_classes" foreground test.
    col = jax.lax.broadcasted_iota(jnp.int32, pred.shape, 1)
    loss = jnp.where(col == jnp.broadcast_to(label, pred.shape), pos, neg)

    # Discard rows past the true N (ragged last block / fully padded steps).
    # Select (not multiply), so garbage/NaN in the padding cannot propagate.
    row = ((p * steps_per_core + i) * block_rows
           + jax.lax.broadcasted_iota(jnp.int32, pred.shape, 0))
    loss = jnp.where(row < n_rows, loss, 0.0)

    # Element-wise VPU accumulate; the only cross-lane reduction is below.
    acc_ref[...] += loss

    @pl.when(i == pl.num_programs(1) - 1)
    def _finalize():
        out_ref[...] = jnp.sum(acc_ref[...], keepdims=True).reshape(1, 1, 1)


def quality_focal_loss_pallas(pred, label, score, *, beta=2.0, loss_weight=1.0,
                              num_cores=2, max_block_rows=8192,
                              vmem_budget_bytes=24 * 1024 * 1024):
    """pred: (N, C) float, label: (N,) int, score: (N,) float -> scalar loss.

    Implements QualityFocalLoss with reduction='mean', weight=None,
    avg_factor=None (the module defaults).
    """
    n, c = pred.shape
    itemsize = jnp.dtype(pred.dtype).itemsize
    c_lanes = _round_up(c, 128)                    # lane-padded width in VMEM

    # VMEM bytes per block row: pred (double-buffered) + packed (label, score)
    # lane-padded to 128 lanes (double-buffered) + the f32 accumulator (x1).
    row_bytes = 2 * c_lanes * itemsize + 2 * 128 * 4 + c_lanes * 4
    tn = min(max_block_rows, vmem_budget_bytes // row_bytes)
    tn = max(8, tn // 8 * 8)
    tn = min(tn, _round_up(n, 8))

    total_steps = pl.cdiv(n, tn)
    spc = pl.cdiv(total_steps, num_cores)          # steps per core
    n_pad = num_cores * spc * tn
    last_blk = total_steps - 1

    # Only the O(N) side input is padded; pred streams unpadded from HBM.
    # label is cast to f32 (exact for class indices) so both fit one array.
    tgt = jnp.stack([label.astype(jnp.float32), score.astype(jnp.float32)],
                    axis=1)
    tgt = jnp.pad(tgt, ((0, n_pad - n), (0, 0)))

    kernel = functools.partial(_qfl_kernel, beta=float(beta), n_rows=n,
                               block_rows=tn, steps_per_core=spc)

    partials = pl.pallas_call(
        kernel,
        out_shape=jax.ShapeDtypeStruct((num_cores, 1, 1), jnp.float32),
        grid_spec=pltpu.PrefetchScalarGridSpec(
            num_scalar_prefetch=0,
            grid=(num_cores, spc),
            in_specs=[
                # Clamp fully-out-of-range steps onto the last valid block;
                # their rows are discarded by the in-kernel row mask.
                pl.BlockSpec(
                    (tn, c),
                    lambda p, i: (jnp.minimum(p * spc + i, last_blk), 0)),
                pl.BlockSpec((tn, 2), lambda p, i: (p * spc + i, 0)),
            ],
            out_specs=pl.BlockSpec((1, 1, 1), lambda p, i: (p, 0, 0)),
            scratch_shapes=[pltpu.VMEM((tn, c), jnp.float32)],
        ),
        compiler_params=pltpu.CompilerParams(
            dimension_semantics=("parallel", "arbitrary"),
            vmem_limit_bytes=48 * 1024 * 1024),
    )(pred, tgt)

    return jnp.sum(partials) * jnp.float32(loss_weight / n)


def _reference_qfl(pred, label, score, beta=2.0, loss_weight=1.0):
    """Pure-JAX reference mirroring the PyTorch implementation."""
    pred = pred.astype(jnp.float32)
    score = score.astype(jnp.float32)

    def bce(x, y):
        return jnp.maximum(x, 0.0) - x * y + jnp.log1p(jnp.exp(-jnp.abs(x)))

    sig = jax.nn.sigmoid(pred)
    neg = bce(pred, 0.0) * sig ** beta
    pos = bce(pred, score[:, None]) * jnp.abs(score[:, None] - sig) ** beta
    col = jnp.arange(pred.shape[1])[None, :]
    is_pos = ((label[:, None] >= 0) & (label[:, None] < pred.shape[1])
              & (col == label[:, None]))
    loss = jnp.where(is_pos, pos, neg).sum(axis=1)
    return loss_weight * loss.mean()


if __name__ == "__main__":
    key = jax.random.PRNGKey(0)
    k1, k2, k3, k4, k5, k6 = jax.random.split(key, 6)

    # Case 1: small aligned shapes (16 samples, 8 classes).
    N, C = 16, 8
    pred = jax.random.normal(k1, (N, C), dtype=jnp.float32) * 2.0
    label = jax.random.randint(k2, (N,), 0, C + 1, dtype=jnp.int32)  # C = bg
    score = jax.random.uniform(k3, (N,), dtype=jnp.float32)
    loss = jax.block_until_ready(
        quality_focal_loss_pallas(pred, label, score, beta=2.0, loss_weight=1.0))
    ref = _reference_qfl(pred, label, score, beta=2.0, loss_weight=1.0)
    assert jnp.allclose(loss, ref, rtol=1e-3, atol=1e-4), (loss, ref)

    # Case 2: ragged N (not a multiple of 8), odd C, negative / bg labels.
    N2, C2 = 23, 5
    pred2 = jax.random.normal(k4, (N2, C2), dtype=jnp.float32) * 3.0
    label2 = jax.random.randint(k5, (N2,), -1, C2 + 1, dtype=jnp.int32)
    score2 = jax.random.uniform(k6, (N2,), dtype=jnp.float32)
    loss2 = jax.block_until_ready(
        quality_focal_loss_pallas(pred2, label2, score2, beta=2.0,
                                  loss_weight=0.5))
    ref2 = _reference_qfl(pred2, label2, score2, beta=2.0, loss_weight=0.5)
    assert jnp.allclose(loss2, ref2, rtol=1e-3, atol=1e-4), (loss2, ref2)

    print("KERNEL_OK")
</pallas_src>

<mosaic_0001>
module attributes {stable_mosaic.version = 11 : i64} {
  func.func @_qfl_kernel(%arg0: i32, %arg1: i32, %arg2: memref<16x8xf32, #tpu.memory_space<vmem>>, %arg3: memref<16x2xf32, #tpu.memory_space<vmem>>, %arg4: memref<1x1x1xf32, #tpu.memory_space<vmem>>, %arg5: memref<16x8xf32, #tpu.memory_space<vmem>>) attributes {dimension_semantics = [#tpu.dimension_semantics<parallel>, #tpu.dimension_semantics<arbitrary>], iteration_bounds = array<i64: 2, 1>, scalar_prefetch = 0 : i64, scratch_operands = 1 : i64, tpu.core_type = #tpu.core_type<tc>, window_params = [{transform_indices = @transform_0, window_bounds = array<i64: 16, 8>}, {transform_indices = @transform_1, window_bounds = array<i64: 16, 2>}, {transform_indices = @transform_2, window_bounds = array<i64: 1, 1, 1>}]} {
    %c0_i32 = arith.constant 0 : i32
    %0 = arith.cmpi eq, %arg1, %c0_i32 : i32
    %1 = arith.extui %0 : i1 to i32
    %c0_i32_0 = arith.constant 0 : i32
    %2 = arith.cmpi ne, %1, %c0_i32_0 : i32
    scf.if %2 {
      %cst_17 = arith.constant 0.000000e+00 : f32
      %54 = vector.broadcast %cst_17 : f32 to vector<16x8xf32>
      %c0_18 = arith.constant 0 : index
      %c0_19 = arith.constant 0 : index
      %55 = vector.load %arg5[%c0_18, %c0_19] : memref<16x8xf32, #tpu.memory_space<vmem>>, vector<16x8xf32>
      tpu.vector_store %arg5[%c0_18, %c0_19], %54 {strides = array<i32>} : memref<16x8xf32, #tpu.memory_space<vmem>>, vector<16x8xf32>,
    } else {
    }
    %c0 = arith.constant 0 : index
    %c0_1 = arith.constant 0 : index
    %3 = vector.load %arg2[%c0, %c0_1] : memref<16x8xf32, #tpu.memory_space<vmem>>, vector<16x8xf32>
    %c0_2 = arith.constant 0 : index
    %c0_3 = arith.constant 0 : index
    %4 = vector.load %arg3[%c0_2, %c0_3] : memref<16x2xf32, #tpu.memory_space<vmem>>, vector<16x2xf32>
    %5 = vector.extract_strided_slice %4 {offsets = [0, 0], sizes = [16, 1], strides = [1, 1]} : vector<16x2xf32> to vector<16x1xf32>
    %6 = arith.fptosi %5 : vector<16x1xf32> to vector<16x1xi32>
    %7 = vector.extract_strided_slice %4 {offsets = [0, 1], sizes = [16, 1], strides = [1, 1]} : vector<16x2xf32> to vector<16x1xf32>
    %cst = arith.constant 5.000000e-01 : f32
    %8 = vector.broadcast %cst : f32 to vector<16x8xf32>
    %9 = arith.mulf %8, %3 : vector<16x8xf32>
    %10 = math.tanh %9 : vector<16x8xf32>
    %cst_4 = arith.constant 5.000000e-01 : f32
    %11 = vector.broadcast %cst_4 : f32 to vector<16x8xf32>
    %12 = arith.mulf %11, %10 : vector<16x8xf32>
    %cst_5 = arith.constant 5.000000e-01 : f32
    %13 = vector.broadcast %cst_5 : f32 to vector<16x8xf32>
    %14 = arith.addf %13, %12 : vector<16x8xf32>
    %cst_6 = arith.constant 8.000000e+00 : f32
    %15 = vector.broadcast %cst_6 : f32 to vector<16x8xf32>
    %16 = arith.cmpf ogt, %3, %15 : vector<16x8xf32>
    %cst_7 = arith.constant 0.000000e+00 : f32
    %17 = vector.broadcast %cst_7 : f32 to vector<16x8xf32>
    %18 = arith.subf %17, %14 : vector<16x8xf32>
    %19 = math.log1p %18 : vector<16x8xf32>
    %cst_8 = arith.constant 0.000000e+00 : f32
    %20 = vector.broadcast %cst_8 : f32 to vector<16x8xf32>
    %21 = arith.subf %20, %19 : vector<16x8xf32>
    %22 = arith.select %16, %3, %21 : vector<16x8xi1>, vector<16x8xf32>
    %23 = arith.mulf %14, %14 : vector<16x8xf32>
    %24 = arith.mulf %22, %23 : vector<16x8xf32>
    %25 = vector.shape_cast %7 : vector<16x1xf32> to vector<16x1xf32>
    %26 = vector.broadcast %25 : vector<16x1xf32> to vector<16x8xf32>
    %27 = arith.mulf %3, %26 : vector<16x8xf32>
    %28 = arith.subf %22, %27 : vector<16x8xf32>
    %29 = arith.subf %26, %14 : vector<16x8xf32>
    %30 = math.absf %29 : vector<16x8xf32>
    %31 = arith.mulf %30, %30 : vector<16x8xf32>
    %32 = arith.mulf %28, %31 : vector<16x8xf32>
    %33 = tpu.iota {dimensions = array<i32: 1>} : vector<16x8xi32>
    %34 = vector.shape_cast %6 : vector<16x1xi32> to vector<16x1xi32>
    %35 = vector.broadcast %34 : vector<16x1xi32> to vector<16x8xi32>
    %36 = arith.cmpi eq, %33, %35 : vector<16x8xi32>
    %37 = arith.select %36, %32, %24 : vector<16x8xi1>, vector<16x8xf32>
    %c1_i32 = arith.constant 1 : i32
    %38 = arith.muli %arg0, %c1_i32 : i32
    %39 = arith.addi %38, %arg1 : i32
    %c16_i32 = arith.constant 16 : i32
    %40 = arith.muli %39, %c16_i32 : i32
    %41 = tpu.iota {dimensions = array<i32: 0>} : vector<16x8xi32>
    %42 = vector.broadcast %40 : i32 to vector<16x8xi32>
    %43 = arith.addi %42, %41 : vector<16x8xi32>
    %c16_i32_9 = arith.constant 16 : i32
    %44 = vector.broadcast %c16_i32_9 : i32 to vector<16x8xi32>
    %45 = arith.cmpi slt, %43, %44 : vector<16x8xi32>
    %cst_10 = arith.constant 0.000000e+00 : f32
    %46 = vector.broadcast %cst_10 : f32 to vector<16x8xf32>
    %47 = arith.select %45, %37, %46 : vector<16x8xi1>, vector<16x8xf32>
    %c0_11 = arith.constant 0 : index
    %c0_12 = arith.constant 0 : index
    %48 = vector.load %arg5[%c0_11, %c0_12] : memref<16x8xf32, #tpu.memory_space<vmem>>, vector<16x8xf32>
    %49 = arith.addf %48, %47 : vector<16x8xf32>
    %c0_13 = arith.constant 0 : index
    %c0_14 = arith.constant 0 : index
    %50 = vector.load %arg5[%c0_13, %c0_14] : memref<16x8xf32, #tpu.memory_space<vmem>>, vector<16x8xf32>
    tpu.vector_store %arg5[%c0_13, %c0_14], %49 {strides = array<i32>} : memref<16x8xf32, #tpu.memory_space<vmem>>, vector<16x8xf32>,
    %c0_i32_15 = arith.constant 0 : i32
    %51 = arith.cmpi eq, %arg1, %c0_i32_15 : i32
    %52 = arith.extui %51 : i1 to i32
    %c0_i32_16 = arith.constant 0 : i32
    %53 = arith.cmpi ne, %52, %c0_i32_16 : i32
    scf.if %53 {
      %c0_17 = arith.constant 0 : index
      %c0_18 = arith.constant 0 : index
      %54 = vector.load %arg5[%c0_17, %c0_18] : memref<16x8xf32, #tpu.memory_space<vmem>>, vector<16x8xf32>
      %55 = vector.shape_cast %54 : vector<16x8xf32> to vector<1x16x8xf32>
      %cst_19 = arith.constant dense<0.000000e+00> : vector<1xf32>
      %56 = vector.multi_reduction <add>, %55, %cst_19 [1, 2] : vector<1x16x8xf32> to vector<1xf32>
      %57 = vector.shape_cast %56 : vector<1xf32> to vector<1x1x1xf32>
      %58 = vector.extract %57[0, 0, 0] : f32 from vector<1x1x1xf32>
      %59 = vector.broadcast %58 : f32 to vector<1x1xf32>
      %60 = vector.shape_cast %59 : vector<1x1xf32> to vector<1x1x1xf32>
      %c0_20 = arith.constant 0 : index
      %c0_21 = arith.constant 0 : index
      %c0_22 = arith.constant 0 : index
      %61 = vector.load %arg4[%c0_20, %c0_21, %c0_22] : memref<1x1x1xf32, #tpu.memory_space<vmem>>, vector<1x1x1xf32>
      tpu.vector_store %arg4[%c0_20, %c0_21, %c0_22], %60 {strides = array<i32>} : memref<1x1x1xf32, #tpu.memory_space<vmem>>, vector<1x1x1xf32>,
    } else {
    }
    return
  }
  func.func @transform_0(%arg0: i32, %arg1: i32) -> (i32, i32) {
    %c1_i32 = arith.constant 1 : i32
    %0 = arith.muli %arg0, %c1_i32 : i32
    %1 = arith.addi %0, %arg1 : i32
    %c0_i32 = arith.constant 0 : i32
    %2 = arith.minsi %1, %c0_i32 : i32
    %c0_i32_0 = arith.constant 0 : i32
    %c0_i32_1 = arith.constant 0 : i32
    return %2, %c0_i32_0 : i32, i32
  }
  func.func @transform_1(%arg0: i32, %arg1: i32) -> (i32, i32) {
    %c1_i32 = arith.constant 1 : i32
    %0 = arith.muli %arg0, %c1_i32 : i32
    %1 = arith.addi %0, %arg1 : i32
    %c0_i32 = arith.constant 0 : i32
    %c0_i32_0 = arith.constant 0 : i32
    return %1, %c0_i32 : i32, i32
  }
  func.func @transform_2(%arg0: i32, %arg1: i32) -> (i32, i32, i32) {
    %c0_i32 = arith.constant 0 : i32
    %c0_i32_0 = arith.constant 0 : i32
    %c0_i32_1 = arith.constant 0 : i32
    return %arg0, %c0_i32, %c0_i32_0 : i32, i32, i32
  }
}

</mosaic_0001>

<llo_original>
// kernel: tpu_custom_call.1
$region0: #{tpu_custom_call.1}
  #allocation0 [shape = 'u32[]', space=smem, size = 0x4, offset = 0x4, fixed_abs, tag = 'smem constant byte address 0x4 - core index']
  #allocation1 [shape = 'u32[72,128]{1,0:T(1,128)}', space=vmem, size = 0x9000, scoped, tag = 'internal scratch']
  #allocation2 [shape = 'f32[16,8]{1,0:T(8,128)}', space=vmem, size = 0x2000, scoped, tag = 'scratch operand']
  %s0 = inlined_call_operand.vmem [shape: f32[16,8], index: 0, kind: input, shape index: {}]
  %s1 = inlined_call_operand.vmem [shape: f32[32,2], index: 1, kind: input, shape index: {}]
  %s2 = inlined_call_operand.vmem [shape: f32[2,1,1], index: 2, kind: output, shape index: {}]
  %s3 = sld [smem:[#allocation0]]
  $region49: #{tpu_custom_call.1} parent=0
    _
  %s5 = ssub.s32 1, %s3
  %s6 = scalar_select 0, %s5, %s3
  loop: start=0, step=1, limit=4
  $region2: #{tpu_custom_call.1} parent=0 // loop_pre_header
    _
  $region3: #{tpu_custom_call.1} parent=0 // loop_header
    %s8 = sphi 0, %s12
    %p9 = scmp.ge.s32.totalorder %s8, 4
    %s15 = sphi 0, %s27
    %s16 = sphi 0, %s23
    %s17 = sphi 0, %s15
    %s18 = sphi 0, %s16
    %s19 = sphi 0, %s17
    %s20 = sphi 0, %s18
    %s36 = sphi 0, %s38
    %s39 = sphi 0, %s36
    %s40 = sphi 0, %s39
    %s56 = sphi 0, %s40
    %s64 = sphi 0, %s66
    %s67 = sphi 0, %s64
    %s68 = sphi 0, %s67
    %s84 = sphi 0, %s68
    %s90 = sphi 0, %s92
    %s93 = sphi 0, %s90
    %s94 = sphi 0, %s93
    %s110 = sphi 0, %s94
  $region4: #{tpu_custom_call.1} parent=0 // loop_header_branch
    %11 = sbr.rel (%p9) target = $region8
  $region5: #{tpu_custom_call.1} parent=0 // loop_body
    %s13 = ssub.s32 %s8, 1
    %s14 = ssub.s32 %s8, 2
    %s21 = sadd.s32 1, %s16
    %p22 = scmp.ge.s32.totalorder %s21, 1
    %s23 = scalar_select %p22, 0, %s21
    %s24 = sadd.s32 1, %s15
    %s25 = scalar_select %p22, %s24, %s15
    %p26 = scmp.ge.s32.totalorder %s25, 2
    %s27 = scalar_select %p26, 0, %s25
    %s28 = sadd.s32 %s15, %s16
    %p29 = scmp.lt.s32.totalorder %s28, 0
    %s30 = scalar_select %p29, %s28, 0
    %s31 = sadd.s32 %s27, %s23
    %p32 = scmp.lt.s32.totalorder %s31, 0
    %s33 = scalar_select %p32, %s31, 0
    %s34 = ssub.s32 %s30, %s33
    %p35 = scmp.eq.s32.totalorder %s34, 0
    %s37 = sadd.s32 %s36, 1
    %s38 = scalar_select %p35, %s36, %s37
    %p41 = pneg %p35
    %p42 = scmp.eq.s32.totalorder %s8, 1
    %p43 = por %p41, %p42
    %p44 = scmp.ne.s32.totalorder %s36, %s39
    %p45 = scmp.eq.s32.totalorder %s8, 0
    %p46 = por %p44, %p45
    %p47 = scmp.ne.s32.totalorder %s36, %s39
    %p48 = scmp.eq.s32.totalorder %s13, 1
    %p49 = por %p47, %p48
    %p50 = scmp.ne.s32.totalorder %s39, %s40
    %p51 = scmp.eq.s32.totalorder %s13, 0
    %p52 = por %p50, %p51
    %p53 = scmp.ne.s32.totalorder %s39, %s40
    %p54 = scmp.eq.s32.totalorder %s14, 1
    %p55 = por %p53, %p54
    %p57 = scmp.ne.s32.totalorder %s40, %s56
    %p58 = scmp.eq.s32.totalorder %s14, 0
    %p59 = por %p57, %p58
    %s60 = sadd.s32 %s15, %s16
    %s61 = sadd.s32 %s27, %s23
    %s62 = ssub.s32 %s60, %s61
    %p63 = scmp.eq.s32.totalorder %s62, 0
    %s65 = sadd.s32 %s64, 1
    %s66 = scalar_select %p63, %s64, %s65
    %p69 = pneg %p63
    %p70 = scmp.eq.s32.totalorder %s8, 1
    %p71 = por %p69, %p70
    %p72 = scmp.ne.s32.totalorder %s64, %s67
    %p73 = scmp.eq.s32.totalorder %s8, 0
    %p74 = por %p72, %p73
    %p75 = scmp.ne.s32.totalorder %s64, %s67
    %p76 = scmp.eq.s32.totalorder %s13, 1
    %p77 = por %p75, %p76
    %p78 = scmp.ne.s32.totalorder %s67, %s68
    %p79 = scmp.eq.s32.totalorder %s13, 0
    %p80 = por %p78, %p79
    %p81 = scmp.ne.s32.totalorder %s67, %s68
    %p82 = scmp.eq.s32.totalorder %s14, 1
    %p83 = por %p81, %p82
    %p85 = scmp.ne.s32.totalorder %s68, %s84
    %p86 = scmp.eq.s32.totalorder %s14, 0
    %p87 = por %p85, %p86
    %s88 = ssub.s32 %s15, %s27
    %p89 = scmp.eq.s32.totalorder %s88, 0
    %s91 = sadd.s32 %s90, 1
    %s92 = scalar_select %p89, %s90, %s91
    %p95 = pneg %p89
    %p96 = scmp.eq.s32.totalorder %s8, 1
    %p97 = por %p95, %p96
    %p98 = scmp.ne.s32.totalorder %s90, %s93
    %p99 = scmp.eq.s32.totalorder %s8, 0
    %p100 = por %p98, %p99
    %p101 = scmp.ne.s32.totalorder %s90, %s93
    %p102 = scmp.eq.s32.totalorder %s13, 1
    %p103 = por %p101, %p102
    %p104 = scmp.ne.s32.totalorder %s93, %s94
    %p105 = scmp.eq.s32.totalorder %s13, 0
    %p106 = por %p104, %p105
    %p107 = scmp.ne.s32.totalorder %s93, %s94
    %p108 = scmp.eq.s32.totalorder %s14, 1
    %p109 = por %p107, %p108
    %p111 = scmp.ne.s32.totalorder %s94, %s110
    %p112 = scmp.eq.s32.totalorder %s14, 0
    %p113 = por %p111, %p112
    %p114 = scmp.le.s32.totalorder 1, %s8
    %p115 = scmp.lt.s32.totalorder %s8, 3
    %p116 = pnand %p114, %p115
    %p117 = pneg %p116
    // Predicated region
    $region9: #{tpu_custom_call.1} parent=5 // pred_check
      _
    $region10: #{tpu_custom_call.1} parent=5 // pred_check_branch
      %119 = sbr.rel (%p116) target = $region12
    $region11: #{tpu_custom_call.1} parent=5 // pred_region
      %s120 = ssub.s32 %s8, 1
    $region12: #{tpu_custom_call.1} parent=5 // pred_fallthru
      _
    %p121 = scmp.lt.s32.totalorder %s8, 2
    // Predicated region
    $region13: #{tpu_custom_call.1} parent=5 // pred_check
      %p122 = pneg %p121
    $region14: #{tpu_custom_call.1} parent=5 // pred_check_branch
      %124 = sbr.rel (%p122) target = $region16
    $region15: #{tpu_custom_call.1} parent=5 // pred_region
      // Predicated region
      $region17: #{tpu_custom_call.1} parent=15 // pred_check
        %p125 = pneg %p46
      $region18: #{tpu_custom_call.1} parent=15 // pred_check_branch
        %127 = sbr.rel (%p125) target = $region20
      $region19: #{tpu_custom_call.1} parent=15 // pred_region
        %s128 = sadd.s32 %s15, %s16
        %p129 = scmp.lt.s32.totalorder %s128, 0
        %s130 = scalar_select %p129, %s128, 0
        %s131 = smul.u32 2, %s130
        %p132 = scmp.lt.s32.totalorder %s131, 1
        %s133 = scalar_select %p132, %s131, 1
        %s134 = smul.addr %s133, 8
        %s135 = scalar_lea.vmem %s0, %s134
        %s136 = sadd.s32 %s15, %s16
        %p137 = scmp.lt.s32.totalorder %s136, 0
        %s138 = scalar_select %p137, %s136, 0
        %s139 = smul.u32 2, %s138
      $region20: #{tpu_custom_call.1} parent=15 // pred_fallthru
        _
      // Predicated region
      $region21: #{tpu_custom_call.1} parent=15 // pred_check
        %p140 = pneg %p74
      $region22: #{tpu_custom_call.1} parent=15 // pred_check_branch
        %142 = sbr.rel (%p140) target = $region24
      $region23: #{tpu_custom_call.1} parent=15 // pred_region
        %s143 = sadd.s32 %s15, %s16
        %s144 = smul.u32 2, %s143
        %p145 = scmp.lt.s32.totalorder %s144, 3
        %s146 = scalar_select %p145, %s144, 3
        %s147 = smul.addr %s146, 8
        %s148 = scalar_lea.vmem %s1, %s147
        %s149 = sadd.s32 %s15, %s16
        %s150 = smul.u32 2, %s149
      $region24: #{tpu_custom_call.1} parent=15 // pred_fallthru
        _
    $region16: #{tpu_custom_call.1} parent=5 // pred_fallthru
      _
    %p151 = scmp.le.s32.totalorder 1, %s8
    %p152 = scmp.lt.s32.totalorder %s8, 3
    %p153 = pnand %p151, %p152
    %p154 = pneg %p153
    // Predicated region
    $region25: #{tpu_custom_call.1} parent=5 // pred_check
      _
    $region26: #{tpu_custom_call.1} parent=5 // pred_check_branch
      %156 = sbr.rel (%p153) target = $region28
    $region27: #{tpu_custom_call.1} parent=5 // pred_region
      %s157 = ssub.s32 %s8, 1
      %s158 = sadd.s32 %s17, %s18
      %p159 = scmp.lt.s32.totalorder %s158, 0
      %s160 = scalar_select %p159, %s158, 0
      %s161 = smul.u32 2, %s160
      %p162 = scmp.lt.s32.totalorder %s161, 1
      %s163 = scalar_select %p162, %s161, 1
      %s164 = smul.addr %s163, 8
      %s165 = scalar_lea.vmem %s0, %s164
      %p166 = pneg %p52
      %p167 = pneg %p49
      %s168 = sadd.s32 %s17, %s18
      %s169 = smul.u32 2, %s168
      %p170 = scmp.lt.s32.totalorder %s169, 3
      %s171 = scalar_select %p170, %s169, 3
      %s172 = smul.addr %s171, 8
      %s173 = scalar_lea.vmem %s1, %s172
      %p174 = pneg %p80
      %p175 = pneg %p77
      %p176 = pneg %p106
      %p177 = pneg %p103
      %p178 = scmp.lt.s32.totalorder %s17, 1
      %s179 = scalar_select %p178, %s17, 1
      %s180 = scalar_lea.vmem %s2, %s179
      %s181 = sadd.s32 %s17, %s18
      %p182 = scmp.lt.s32.totalorder %s181, 0
      %s183 = scalar_select %p182, %s181, 0
      %s184 = smul.u32 2, %s183
      %p185 = scmp.lt.s32.totalorder %s184, 1
      %s186 = scalar_select %p185, %s184, 1
      %s187 = smul.addr %s186, 8
      %s188 = scalar_lea.vmem %s0, %s187
      %s189 = sadd.s32 %s17, %s18
      %p190 = scmp.lt.s32.totalorder %s189, 0
      %s191 = scalar_select %p190, %s189, 0
      %s192 = smul.u32 2, %s191
      %s193 = sadd.s32 %s17, %s18
      %s194 = smul.u32 2, %s193
      %p195 = scmp.lt.s32.totalorder %s194, 3
      %s196 = scalar_select %p195, %s194, 3
      %s197 = smul.addr %s196, 8
      %s198 = scalar_lea.vmem %s1, %s197
      %s199 = sadd.s32 %s17, %s18
      %s200 = smul.u32 2, %s199
      %p201 = scmp.lt.s32.totalorder %s17, 1
      %s202 = scalar_select %p201, %s17, 1
      %s203 = scalar_lea.vmem %s2, %s202
      %p204 = scmp.eq.s32.totalorder %s18, 0
      // Predicated region
      $region29: #{tpu_custom_call.1} parent=27 // pred_check
        %p205 = pneg %p204
      $region30: #{tpu_custom_call.1} parent=27 // pred_check_branch
        %207 = sbr.rel (%p205) target = $region32
      $region31: #{tpu_custom_call.1} parent=27 // pred_region
        %vm208 = vcmask 64512
        %209 = vst.msk [vmem:[#allocation2] sm:$0xff] %vm208, 0.0
        %210 = vst.msk [vmem:[#allocation2 + $0x8] sm:$0xff] %vm208, 0.0
      $region32: #{tpu_custom_call.1} parent=27 // pred_fallthru
        _
      %v211 = vld [vmem:[%s188] sm:$0xff]
      %v212 = vld [vmem:[%s188 + $0x8] sm:$0xff]
      %v213 = vld [vmem:[%s198] sm:$0xff]
      %v214 = vld [vmem:[%s198 + $0x8] sm:$0xff]
      %v215 = vcvt.f32.s32.to.zero.pseudo %v213
      %v216 = vcvt.f32.s32.to.zero.pseudo %v214
      %v217 = vmul.f32 %v211, 0.5
      %v218 = vmul.f32 %v212, 0.5
      %v219 = vtanh.pop %v217
      %v220 = vtanh.pop %v218
      %v221 = vmul.f32 %v219, 0.5
      %v222 = vmul.f32 %v220, 0.5
      %v223 = vadd.f32 %v221, 0.5
      %v224 = vadd.f32 %v222, 0.5
      %vm225 = vcmp.gt.f32.partialorder %v211, 8.0
      %vm226 = vcmp.gt.f32.partialorder %v212, 8.0
      %v227 = vsub.f32 0.0, %v223
      %v228 = vsub.f32 0.0, %v224
      %v229 = vadd.f32 %v227, 1.0
      %v230 = vlog2.pop %v229
      %v231 = vmul.f32 %v230, 0.6931472
      %v232 = vmul.f32 -0.5, %v227
      %v233 = vadd.f32 %v232, 1.0
      %v234 = vmul.f32 %v233, %v227
      %v235 = vand.u32 2147483647, %v227
      %vm236 = vcmp.lt.f32.partialorder %v235, 0.0004427343
      %v237 = vsel %vm236, %v234, %v231
      %v238 = vadd.f32 %v228, 1.0
      %v239 = vlog2.pop %v238
      %v240 = vmul.f32 %v239, 0.6931472
      %v241 = vmul.f32 -0.5, %v228
      %v242 = vadd.f32 %v241, 1.0
      %v243 = vmul.f32 %v242, %v228
      %v244 = vand.u32 2147483647, %v228
      %vm245 = vcmp.lt.f32.partialorder %v244, 0.0004427343
      %v246 = vsel %vm245, %v243, %v240
      %v247 = vsub.f32 0.0, %v237
      %v248 = vsub.f32 0.0, %v246
      %v249 = vsel %vm225, %v211, %v247
      %v250 = vsel %vm226, %v212, %v248
      %v251 = vmul.f32 %v223, %v223
      %v252 = vmul.f32 %v224, %v224
      %v253 = vmul.f32 %v249, %v251
      %v254 = vmul.f32 %v250, %v252
      %256 = vset.pattern.permute.xlu0 1
      %257 = vperm.xlu0 %256, %v213
      %v258 = vpop.permute.xlu0 %257
      %261 = vset.pattern.permute.xlu0 1
      %262 = vperm.xlu0 %261, %v214
      %v263 = vpop.permute.xlu0 %262
      %v265 = vmul.f32 %v211, %v258
      %v266 = vmul.f32 %v212, %v263
      %v267 = vsub.f32 %v249, %v265
      %v268 = vsub.f32 %v250, %v266
      %v269 = vsub.f32 %v258, %v223
      %v270 = vsub.f32 %v263, %v224
      %v271 = vand.u32 2147483647, %v269
      %v272 = vand.u32 2147483647, %v270
      %v273 = vmul.f32 %v271, %v271
      %v274 = vmul.f32 %v272, %v272
      %v275 = vmul.f32 %v267, %v273
      %v276 = vmul.f32 %v268, %v274
      %v277 = vlaneseq
      %v278 = vand.u32 %v277, 127
      %279 = vset.pattern.permute.xlu0 0
      %280 = vperm.xlu0 %279, %v215
      %v281 = vpop.permute.xlu0 %280
      %282 = vset.pattern.permute.xlu0 0
      %283 = vperm.xlu0 %282, %v216
      %v284 = vpop.permute.xlu0 %283
      %vm285 = vcmp.eq.s32.totalorder %v278, %v281
      %vm286 = vcmp.eq.s32.totalorder %v278, %v284
      %v287 = vsel %vm285, %v275, %v253
      %v288 = vsel %vm286, %v276, %v254
      %s289 = sadd.s32 %s17, %s18
      %s290 = smul.u32 %s289, 16
      %v291 = vlaneseq
      %v292 = vshrl.u32 %v291, 7
      %v293 = vadd.s32 %v292, 8
      %v294 = vstv %s290
      %v295 = vadd.s32 %v294, %v292
      %v296 = vadd.s32 %v294, %v293
      %vm297 = vcmp.lt.s32.totalorder %v295, 16
      %vm298 = vcmp.lt.s32.totalorder %v296, 16
      %v299 = vsel %vm297, %v287, 0.0
      %v300 = vsel %vm298, %v288, 0.0
      %v301 = vld [vmem:[#allocation2] sm:$0xff]
      %v302 = vld [vmem:[#allocation2 + $0x8] sm:$0xff]
      %v303 = vadd.f32 %v301, %v299
      %v304 = vadd.f32 %v302, %v300
      %vm305 = vcmask 64512
      %306 = vst.msk [vmem:[#allocation2] sm:$0xff] %vm305, %v303
      %307 = vst.msk [vmem:[#allocation2 + $0x8] sm:$0xff] %vm305, %v304
      // Predicated region
      $region33: #{tpu_custom_call.1} parent=27 // pred_check
        %p308 = pneg %p204
      $region34: #{tpu_custom_call.1} parent=27 // pred_check_branch
        %310 = sbr.rel (%p308) target = $region36
      $region35: #{tpu_custom_call.1} parent=27 // pred_region
        %v311 = vld [vmem:[#allocation2] sm:$0xff]
        %v312 = vld [vmem:[#allocation2 + $0x8] sm:$0xff]
        %v313 = vsel %vm305, %v311, 0.0
        %v314 = vsel %vm305, %v312, 0.0
        %v315 = vadd.f32 %v313, %v314
        %316 = vadd.xlane.f32.xlu0 %v315
        %v317 = vpop.xlane.xlu0 %316
        %v318 = vrot.slane %v317, 4
        %v319 = vadd.f32 %v317, %v318
        %v320 = vrot.slane %v319, 2
        %v321 = vadd.f32 %v319, %v320
        %v322 = vrot.slane %v321, 1
        %v323 = vadd.f32 %v321, %v322
        %s324 = vtos %v323
        %v325 = vstv %s324
        %vm326 = vcmask 0
        %327 = vst.msk [vmem:[%s203] sm:$0x1] %vm326, %v325
      $region36: #{tpu_custom_call.1} parent=27 // pred_fallthru
        _
      %p328 = scmp.lt.s32.totalorder %s17, 1
      %s329 = scalar_select %p328, %s17, 1
      %s330 = scalar_lea.vmem %s2, %s329
      // Predicated region
      $region37: #{tpu_custom_call.1} parent=27 // pred_check
        %p331 = pneg %p103
      $region38: #{tpu_custom_call.1} parent=27 // pred_check_branch
        %333 = sbr.rel (%p331) target = $region40
      $region39: #{tpu_custom_call.1} parent=27 // pred_region
        _
      $region40: #{tpu_custom_call.1} parent=27 // pred_fallthru
        _
    $region28: #{tpu_custom_call.1} parent=5 // pred_fallthru
      _
    %p334 = scmp.le.s32.totalorder 2, %s8
    // Predicated region
    $region41: #{tpu_custom_call.1} parent=5 // pred_check
      %p335 = pneg %p334
    $region42: #{tpu_custom_call.1} parent=5 // pred_check_branch
      %337 = sbr.rel (%p335) target = $region44
    $region43: #{tpu_custom_call.1} parent=5 // pred_region
      %s338 = ssub.s32 %s8, 2
      // Predicated region
      $region45: #{tpu_custom_call.1} parent=43 // pred_check
        %p339 = pneg %p109
      $region46: #{tpu_custom_call.1} parent=43 // pred_check_branch
        %341 = sbr.rel (%p339) target = $region48
      $region47: #{tpu_custom_call.1} parent=43 // pred_region
        %p342 = scmp.lt.s32.totalorder %s19, 1
        %s343 = scalar_select %p342, %s19, 1
        %s344 = scalar_lea.vmem %s2, %s343
      $region48: #{tpu_custom_call.1} parent=43 // pred_fallthru
        _
    $region44: #{tpu_custom_call.1} parent=5 // pred_fallthru
      _
  $region6: #{tpu_custom_call.1} parent=0 // loop_footer
    %s12 = sadd.s32 1, %s8
  $region7: #{tpu_custom_call.1} parent=0 // loop_footer_branch
    %7 = sbr.rel target = $region3
  $region8: #{tpu_custom_call.1} parent=0 // loop_exit
    _

</llo_original>
